<compile_context>
chip_gen: v6e
topology: v6e:2x2x1
jax: 0.10.0
libtpu: 0.0.40
codegen_flags: <defaults>
</compile_context>

<pallas_src>
import functools

import jax
import jax.numpy as jnp
from jax.experimental import pallas as pl
from jax.experimental.pallas import tpu as pltpu


# ----------------- fused kernel: zw = adj @ ((x / norm) @ W_g) -----------------
def _fused_propagate_kernel(adj_ref, x_ref, w_ref, out_ref):
    # adj_ref : (TM, TK) bf16 block of adjacency
    # x_ref   : (TK, H)  bf16 block of the concatenated state (un-normalized)
    # w_ref   : (H, H)   bf16 weight, ALREADY scaled by 1/norm in the wrapper
    # out_ref : (TM, H)  f32 output tile, resident across the k axis (accumulator)
    @pl.when(pl.program_id(1) == 0)
    def _():
        out_ref[...] = jnp.zeros_like(out_ref)

    # Recompute the feature transform for this k tile on the fly (free filler on a
    # memory-bound kernel) and immediately aggregate it with the adj block.
    xw = jnp.dot(x_ref[...], w_ref[...], preferred_element_type=jnp.float32)
    out_ref[...] += jnp.dot(
        adj_ref[...], xw.astype(adj_ref.dtype), preferred_element_type=jnp.float32
    )


def _pick_tiles(n_total, tm_desired, tk_desired):
    """Pick (tm, tk) that divide n_total; keep >=2 row tiles for v7x megacore."""
    def largest_divisor_tile(desired):
        t = min(desired, n_total)
        while t > 128 and n_total % t != 0:
            t -= 128
        if n_total % t != 0:
            t = 128
        return t

    tk = largest_divisor_tile(tk_desired)
    tm = largest_divisor_tile(tm_desired)
    # keep at least 2 row tiles so the "parallel" axis can shard across 2 TCs (v7x)
    if n_total // tm < 2 and tm % 2 == 0 and (tm // 2) % 8 == 0 and n_total % (tm // 2) == 0:
        tm //= 2
    return tm, tk


# ------------------------------- wrapper --------------------------------------
def propagate_pallas(adj, last_xu, last_xi, w_g, *, tm=512, tk=512):
    """ODEH.forward / PropagateUnit.forward: returns (yu, yi)."""
    n_users = last_xu.shape[0]
    n_items = last_xi.shape[0]
    hidden = last_xu.shape[1]
    n_total = n_users + n_items
    assert adj.shape == (n_total, n_total)
    assert hidden % 128 == 0
    assert n_total % 128 == 0

    tm, tk = _pick_tiles(n_total, tm, tk)

    # ---- hoisted, tile-invariant work (done ONCE, outside the grid) ----
    # global max row L2 norm over both halves (no f32 concat materialized);
    # 1/norm folded into the tiny (H, H) weight.
    sq_u = jnp.max(jnp.sum(last_xu.astype(jnp.float32) ** 2, axis=1))
    sq_i = jnp.max(jnp.sum(last_xi.astype(jnp.float32) ** 2, axis=1))
    norm = jnp.sqrt(jnp.maximum(sq_u, sq_i))
    norm = jnp.maximum(norm, jnp.float32(1e-12))  # guard degenerate all-zero state only
    w_scaled = (w_g.astype(jnp.float32) * (1.0 / norm)).astype(jnp.bfloat16)

    # single bf16 materialization of the concatenated state
    x_bf = jnp.concatenate(
        [last_xu.astype(jnp.bfloat16), last_xi.astype(jnp.bfloat16)], axis=0
    )
    adj_bf = adj.astype(jnp.bfloat16)

    # VMEM footprint (double-buffered inputs/outputs) + slack, capped at v7x physical.
    vmem_bytes = 2 * (tm * tk * 2 + tk * hidden * 2 + hidden * hidden * 2) + 2 * (
        tm * hidden * 4
    )
    vmem_limit = int(min(max(4 * vmem_bytes, 32 * 1024 * 1024), 64 * 1024 * 1024))

    n_row_tiles = n_total // tm
    n_k_tiles = n_total // tk

    zw = pl.pallas_call(
        _fused_propagate_kernel,
        out_shape=jax.ShapeDtypeStruct((n_total, hidden), jnp.float32),
        grid_spec=pltpu.PrefetchScalarGridSpec(
            num_scalar_prefetch=0,
            grid=(n_row_tiles, n_k_tiles),
            in_specs=[
                pl.BlockSpec((tm, tk), lambda i, k: (i, k)),          # adj block
                pl.BlockSpec((tk, hidden), lambda i, k: (k, 0)),      # state block
                pl.BlockSpec((hidden, hidden), lambda i, k: (0, 0)),  # scaled weight
            ],
            out_specs=pl.BlockSpec((tm, hidden), lambda i, k: (i, 0)),
        ),
        compiler_params=pltpu.CompilerParams(
            dimension_semantics=("parallel", "arbitrary"),
            vmem_limit_bytes=vmem_limit,
        ),
        cost_estimate=pl.CostEstimate(
            # adj @ xw  +  recomputed x @ W per grid step
            flops=2 * n_total * n_total * hidden
            + 2 * n_row_tiles * n_total * hidden * hidden,
            transcendentals=0,
            bytes_accessed=(
                n_total * n_total * 2                      # adj (bf16), read once
                + n_row_tiles * n_total * hidden * 2       # x re-read per row tile (bf16)
                + n_row_tiles * n_k_tiles * hidden * hidden * 2  # weight per step (bf16)
                + n_total * hidden * 4                     # f32 output write
            ),
        ),
    )(adj_bf, x_bf, w_scaled)

    yu = zw[:n_users]
    yi = zw[n_users:]
    return yu, yi


# --------------------------- parameter setup ----------------------------------
def trunc_normal(key, shape, mean=0.0, std=1.0):
    # matches torch trunc_normal_: normal, fmod 2 (keeps sign, |x| < 2), scale, shift
    x = jax.random.normal(key, shape, dtype=jnp.float32)
    x = jnp.fmod(x, 2.0)
    return x * std + mean


def init_odeh_params(key, n_users, n_items, hidden_size):
    k_u, k_i, k_w = jax.random.split(key, 3)
    user_states = trunc_normal(k_u, (n_users, hidden_size), std=0.01)  # unused by forward output
    item_states = trunc_normal(k_i, (n_items, hidden_size), std=0.01)  # unused by forward output
    # deterministic WGNN weight (see TODO above)
    w_g = jax.random.normal(k_w, (hidden_size, hidden_size), dtype=jnp.float32) * (
        1.0 / jnp.sqrt(hidden_size)
    )
    return {"user_states": user_states, "item_states": item_states, "w_g": w_g}


# ------------------------------ reference -------------------------------------
def propagate_ref(adj, last_xu, last_xi, w_g):
    x = jnp.concatenate([last_xu, last_xi], axis=0)
    norm = jnp.max(jnp.sqrt(jnp.sum(x * x, axis=1)))
    x_n = x / norm
    zw = adj @ (x_n @ w_g)
    return zw[: last_xu.shape[0]], zw[last_xu.shape[0]:]


# --------------------------------- main ----------------------------------------
if __name__ == "__main__":
    n_users, n_items, hidden = 128, 128, 128
    n_total = n_users + n_items

    key = jax.random.PRNGKey(0)
    k_adj, k_xu, k_xi, k_p = jax.random.split(key, 4)

    params = init_odeh_params(k_p, n_users, n_items, hidden)

    # dense "sparse" adjacency (sparsified, row-normalized random weights)
    adj = jax.random.uniform(k_adj, (n_total, n_total), dtype=jnp.float32)
    adj = adj * (adj > 0.7)
    adj = adj / (jnp.sum(adj, axis=1, keepdims=True) + 1e-8)

    last_xu = jax.random.normal(k_xu, (n_users, hidden), dtype=jnp.float32)
    last_xi = jax.random.normal(k_xi, (n_items, hidden), dtype=jnp.float32)
    dt = jnp.float32(0.1)  # unused by PropagateUnit.forward, kept for signature parity

    prop = jax.jit(functools.partial(propagate_pallas, tm=512, tk=512))
    yu, yi = prop(adj, last_xu, last_xi, params["w_g"])
    jax.block_until_ready((yu, yi))

    # sanity check against plain-JAX f32 reference (tolerance accounts for bf16 MXU inputs)
    yu_r, yi_r = propagate_ref(adj, last_xu, last_xi, params["w_g"])
    assert yu.shape == (n_users, hidden) and yi.shape == (n_items, hidden)
    assert bool(jnp.all(jnp.isfinite(yu))) and bool(jnp.all(jnp.isfinite(yi)))
    assert bool(jnp.allclose(yu, yu_r, rtol=5e-2, atol=5e-3))
    assert bool(jnp.allclose(yi, yi_r, rtol=5e-2, atol=5e-3))

    print("KERNEL_OK")
</pallas_src>

<mosaic_0001>
module attributes {stable_mosaic.version = 11 : i64} {
  func.func @_fused_propagate_kernel(%arg0: i32, %arg1: i32, %arg2: memref<128x256xbf16, #tpu.memory_space<vmem>>, %arg3: memref<256x128xbf16, #tpu.memory_space<vmem>>, %arg4: memref<128x128xbf16, #tpu.memory_space<vmem>>, %arg5: memref<128x128xf32, #tpu.memory_space<vmem>>) attributes {dimension_semantics = [#tpu.dimension_semantics<parallel>, #tpu.dimension_semantics<arbitrary>], iteration_bounds = array<i64: 2, 1>, scalar_prefetch = 0 : i64, scratch_operands = 0 : i64, tpu.core_type = #tpu.core_type<tc>, window_params = [{transform_indices = @transform_0, window_bounds = array<i64: 128, 256>}, {transform_indices = @transform_1, window_bounds = array<i64: 256, 128>}, {pipeline_mode = #tpu.pipeline_mode<synchronous>, transform_indices = @transform_2, window_bounds = array<i64: 128, 128>}, {transform_indices = @transform_3, window_bounds = array<i64: 128, 128>}]} {
    %c0_i32 = arith.constant 0 : i32
    %0 = arith.cmpi eq, %arg1, %c0_i32 : i32
    %1 = arith.extui %0 : i1 to i32
    %c0_i32_0 = arith.constant 0 : i32
    %2 = arith.cmpi ne, %1, %c0_i32_0 : i32
    scf.if %2 {
      %cst_11 = arith.constant 0.000000e+00 : f32
      %12 = vector.broadcast %cst_11 : f32 to vector<128x128xf32>
      %c0_12 = arith.constant 0 : index
      %c0_13 = arith.constant 0 : index
      %13 = vector.load %arg5[%c0_12, %c0_13] : memref<128x128xf32, #tpu.memory_space<vmem>>, vector<128x128xf32>
      tpu.vector_store %arg5[%c0_12, %c0_13], %12 {strides = array<i32>} : memref<128x128xf32, #tpu.memory_space<vmem>>, vector<128x128xf32>,
    } else {
    }
    %c0 = arith.constant 0 : index
    %c0_1 = arith.constant 0 : index
    %3 = vector.load %arg3[%c0, %c0_1] : memref<256x128xbf16, #tpu.memory_space<vmem>>, vector<256x128xbf16>
    %c0_2 = arith.constant 0 : index
    %c0_3 = arith.constant 0 : index
    %4 = vector.load %arg4[%c0_2, %c0_3] : memref<128x128xbf16, #tpu.memory_space<vmem>>, vector<128x128xbf16>
    %cst = arith.constant dense<0.000000e+00> : vector<256x128xf32>
    %5 = tpu.matmul %3, %4, %cst {dimension_numbers = #tpu.dot_dimension_numbers<[1], [0], [0], [1], [0, 0, 1, 1], [], []>} : vector<256x128xbf16>, vector<128x128xbf16>, vector<256x128xf32> -> vector<256x128xf32>
    %c0_4 = arith.constant 0 : index
    %c0_5 = arith.constant 0 : index
    %6 = vector.load %arg5[%c0_4, %c0_5] : memref<128x128xf32, #tpu.memory_space<vmem>>, vector<128x128xf32>
    %c0_6 = arith.constant 0 : index
    %c0_7 = arith.constant 0 : index
    %7 = vector.load %arg2[%c0_6, %c0_7] : memref<128x256xbf16, #tpu.memory_space<vmem>>, vector<128x256xbf16>
    %8 = arith.truncf %5 : vector<256x128xf32> to vector<256x128xbf16>
    %cst_8 = arith.constant dense<0.000000e+00> : vector<128x128xf32>
    %9 = tpu.matmul %7, %8, %cst_8 {dimension_numbers = #tpu.dot_dimension_numbers<[1], [0], [0], [1], [0, 0, 1, 1], [], []>} : vector<128x256xbf16>, vector<256x128xbf16>, vector<128x128xf32> -> vector<128x128xf32>
    %10 = arith.addf %6, %9 : vector<128x128xf32>
    %c0_9 = arith.constant 0 : index
    %c0_10 = arith.constant 0 : index
    %11 = vector.load %arg5[%c0_9, %c0_10] : memref<128x128xf32, #tpu.memory_space<vmem>>, vector<128x128xf32>
    tpu.vector_store %arg5[%c0_9, %c0_10], %10 {strides = array<i32>} : memref<128x128xf32, #tpu.memory_space<vmem>>, vector<128x128xf32>,
    return
  }
  func.func @transform_0(%arg0: i32, %arg1: i32) -> (i32, i32) {
    %c0_i32 = arith.constant 0 : i32
    return %arg0, %arg1 : i32, i32
  }
  func.func @transform_1(%arg0: i32, %arg1: i32) -> (i32, i32) {
    %c0_i32 = arith.constant 0 : i32
    %c0_i32_0 = arith.constant 0 : i32
    return %arg1, %c0_i32 : i32, i32
  }
  func.func @transform_2(%arg0: i32, %arg1: i32) -> (i32, i32) {
    %c0_i32 = arith.constant 0 : i32
    %c0_i32_0 = arith.constant 0 : i32
    %c0_i32_1 = arith.constant 0 : i32
    return %c0_i32, %c0_i32_0 : i32, i32
  }
  func.func @transform_3(%arg0: i32, %arg1: i32) -> (i32, i32) {
    %c0_i32 = arith.constant 0 : i32
    %c0_i32_0 = arith.constant 0 : i32
    return %arg0, %c0_i32 : i32, i32
  }
}

</mosaic_0001>

<llo_original>
// kernel: propagate_pallas.1
$region0: #{propagate_pallas.1}
  #allocation0 [shape = 'u32[]', space=smem, size = 0x4, offset = 0x4, fixed_abs, tag = 'smem constant byte address 0x4 - core index']
  #allocation1 [shape = 'u32[144,128]{1,0:T(1,128)}', space=vmem, size = 0x12000, scoped, tag = 'internal scratch']
  %s0 = inlined_call_operand.vmem [shape: bf16[256,256], index: 0, kind: input, shape index: {}]
  %s1 = inlined_call_operand.vmem [shape: bf16[256,128], index: 1, kind: input, shape index: {}]
  %s2 = inlined_call_operand.vmem [shape: bf16[128,128], index: 2, kind: input, shape index: {}]
  %s3 = inlined_call_operand.vmem [shape: f32[256,128], index: 3, kind: output, shape index: {}]
  %s4 = sld [smem:[#allocation0]]
  $region49: #{propagate_pallas.1} parent=0
    _
  %s6 = ssub.s32 1, %s4
  %s7 = scalar_select 0, %s6, %s4
  loop: start=0, step=1, limit=4
  $region2: #{propagate_pallas.1} parent=0 // loop_pre_header
    _
  $region3: #{propagate_pallas.1} parent=0 // loop_header
    %s9 = sphi 0, %s13
    %p10 = scmp.ge.s32.totalorder %s9, 4
    %s16 = sphi 0, %s28
    %s17 = sphi 0, %s24
    %s18 = sphi 0, %s16
    %s19 = sphi 0, %s17
    %s20 = sphi 0, %s18
    %s21 = sphi 0, %s19
    %s33 = sphi 0, %s35
    %s36 = sphi 0, %s33
    %s37 = sphi 0, %s36
    %s53 = sphi 0, %s37
    %s59 = sphi 0, %s61
    %s62 = sphi 0, %s59
    %s63 = sphi 0, %s62
    %s79 = sphi 0, %s63
    %s83 = sphi 0, %s83
    %s85 = sphi 0, %s83
    %s86 = sphi 0, %s85
    %s100 = sphi 0, %s86
    %s106 = sphi 0, %s108
    %s109 = sphi 0, %s106
    %s110 = sphi 0, %s109
    %s126 = sphi 0, %s110
  $region4: #{propagate_pallas.1} parent=0 // loop_header_branch
    %12 = sbr.rel (%p10) target = $region8
  $region5: #{propagate_pallas.1} parent=0 // loop_body
    %s14 = ssub.s32 %s9, 1
    %s15 = ssub.s32 %s9, 2
    %s22 = sadd.s32 1, %s17
    %p23 = scmp.ge.s32.totalorder %s22, 1
    %s24 = scalar_select %p23, 0, %s22
    %s25 = sadd.s32 1, %s16
    %s26 = scalar_select %p23, %s25, %s16
    %p27 = scmp.ge.s32.totalorder %s26, 2
    %s28 = scalar_select %p27, 0, %s26
    %s29 = ssub.s32 %s16, %s28
    %s30 = ssub.s32 %s17, %s24
    %s31 = sor.u32 %s29, %s30
    %p32 = scmp.eq.s32.totalorder %s31, 0
    %s34 = sadd.s32 %s33, 1
    %s35 = scalar_select %p32, %s33, %s34
    %p38 = pneg %p32
    %p39 = scmp.eq.s32.totalorder %s9, 1
    %p40 = por %p38, %p39
    %p41 = scmp.ne.s32.totalorder %s33, %s36
    %p42 = scmp.eq.s32.totalorder %s9, 0
    %p43 = por %p41, %p42
    %p44 = scmp.ne.s32.totalorder %s33, %s36
    %p45 = scmp.eq.s32.totalorder %s14, 1
    %p46 = por %p44, %p45
    %p47 = scmp.ne.s32.totalorder %s36, %s37
    %p48 = scmp.eq.s32.totalorder %s14, 0
    %p49 = por %p47, %p48
    %p50 = scmp.ne.s32.totalorder %s36, %s37
    %p51 = scmp.eq.s32.totalorder %s15, 1
    %p52 = por %p50, %p51
    %p54 = scmp.ne.s32.totalorder %s37, %s53
    %p55 = scmp.eq.s32.totalorder %s15, 0
    %p56 = por %p54, %p55
    %s57 = ssub.s32 %s17, %s24
    %p58 = scmp.eq.s32.totalorder %s57, 0
    %s60 = sadd.s32 %s59, 1
    %s61 = scalar_select %p58, %s59, %s60
    %p64 = pneg %p58
    %p65 = scmp.eq.s32.totalorder %s9, 1
    %p66 = por %p64, %p65
    %p67 = scmp.ne.s32.totalorder %s59, %s62
    %p68 = scmp.eq.s32.totalorder %s9, 0
    %p69 = por %p67, %p68
    %p70 = scmp.ne.s32.totalorder %s59, %s62
    %p71 = scmp.eq.s32.totalorder %s14, 1
    %p72 = por %p70, %p71
    %p73 = scmp.ne.s32.totalorder %s62, %s63
    %p74 = scmp.eq.s32.totalorder %s14, 0
    %p75 = por %p73, %p74
    %p76 = scmp.ne.s32.totalorder %s62, %s63
    %p77 = scmp.eq.s32.totalorder %s15, 1
    %p78 = por %p76, %p77
    %p80 = scmp.ne.s32.totalorder %s63, %s79
    %p81 = scmp.eq.s32.totalorder %s15, 0
    %p82 = por %p80, %p81
    %s84 = sadd.s32 %s83, 1
    %p87 = scmp.eq.s32.totalorder %s9, 1
    %p88 = scmp.ne.s32.totalorder %s83, %s85
    %p89 = scmp.eq.s32.totalorder %s9, 0
    %p90 = por %p88, %p89
    %p91 = scmp.ne.s32.totalorder %s83, %s85
    %p92 = scmp.eq.s32.totalorder %s14, 1
    %p93 = por %p91, %p92
    %p94 = scmp.ne.s32.totalorder %s85, %s86
    %p95 = scmp.eq.s32.totalorder %s14, 0
    %p96 = por %p94, %p95
    %p97 = scmp.ne.s32.totalorder %s85, %s86
    %p98 = scmp.eq.s32.totalorder %s15, 1
    %p99 = por %p97, %p98
    %p101 = scmp.ne.s32.totalorder %s86, %s100
    %p102 = scmp.eq.s32.totalorder %s15, 0
    %p103 = por %p101, %p102
    %s104 = ssub.s32 %s16, %s28
    %p105 = scmp.eq.s32.totalorder %s104, 0
    %s107 = sadd.s32 %s106, 1
    %s108 = scalar_select %p105, %s106, %s107
    %p111 = pneg %p105
    %p112 = scmp.eq.s32.totalorder %s9, 1
    %p113 = por %p111, %p112
    %p114 = scmp.ne.s32.totalorder %s106, %s109
    %p115 = scmp.eq.s32.totalorder %s9, 0
    %p116 = por %p114, %p115
    %p117 = scmp.ne.s32.totalorder %s106, %s109
    %p118 = scmp.eq.s32.totalorder %s14, 1
    %p119 = por %p117, %p118
    %p120 = scmp.ne.s32.totalorder %s109, %s110
    %p121 = scmp.eq.s32.totalorder %s14, 0
    %p122 = por %p120, %p121
    %p123 = scmp.ne.s32.totalorder %s109, %s110
    %p124 = scmp.eq.s32.totalorder %s15, 1
    %p125 = por %p123, %p124
    %p127 = scmp.ne.s32.totalorder %s110, %s126
    %p128 = scmp.eq.s32.totalorder %s15, 0
    %p129 = por %p127, %p128
    %p130 = scmp.le.s32.totalorder 1, %s9
    %p131 = scmp.lt.s32.totalorder %s9, 3
    %p132 = pnand %p130, %p131
    %p133 = pneg %p132
    // Predicated region
    $region9: #{propagate_pallas.1} parent=5 // pred_check
      _
    $region10: #{propagate_pallas.1} parent=5 // pred_check_branch
      %135 = sbr.rel (%p132) target = $region12
    $region11: #{propagate_pallas.1} parent=5 // pred_region
      %s136 = ssub.s32 %s9, 1
      // Predicated region
      $region13: #{propagate_pallas.1} parent=11 // pred_check
        %p137 = pneg %p75
      $region14: #{propagate_pallas.1} parent=11 // pred_check_branch
        %139 = sbr.rel (%p137) target = $region16
      $region15: #{propagate_pallas.1} parent=11 // pred_region
        %s140 = smul.u32 32, %s19
        %p141 = scmp.lt.s32.totalorder %s140, 31
        %s142 = scalar_select %p141, %s140, 31
        %s143 = smul.addr %s142, 4
        %s144 = scalar_lea.vmem %s1, %s143
        %s145 = smul.u32 32, %s19
      $region16: #{propagate_pallas.1} parent=11 // pred_fallthru
        _
      // Predicated region
      $region17: #{propagate_pallas.1} parent=11 // pred_check
        %p146 = pneg %p96
      $region18: #{propagate_pallas.1} parent=11 // pred_check_branch
        %148 = sbr.rel (%p146) target = $region20
      $region19: #{propagate_pallas.1} parent=11 // pred_region
        _
      $region20: #{propagate_pallas.1} parent=11 // pred_fallthru
        _
    $region12: #{propagate_pallas.1} parent=5 // pred_fallthru
      _
    %p149 = scmp.lt.s32.totalorder %s9, 2
    // Predicated region
    $region21: #{propagate_pallas.1} parent=5 // pred_check
      %p150 = pneg %p149
    $region22: #{propagate_pallas.1} parent=5 // pred_check_branch
      %152 = sbr.rel (%p150) target = $region24
    $region23: #{propagate_pallas.1} parent=5 // pred_region
      // Predicated region
      $region25: #{propagate_pallas.1} parent=23 // pred_check
        %p153 = pneg %p43
      $region26: #{propagate_pallas.1} parent=23 // pred_check_branch
        %155 = sbr.rel (%p153) target = $region28
      $region27: #{propagate_pallas.1} parent=23 // pred_region
        %s156 = smul.u32 16, %s16
        %s157 = smul.u32 2, %s17
        %p158 = scmp.lt.s32.totalorder %s156, 31
        %s159 = scalar_select %p158, %s156, 31
        %p160 = scmp.lt.s32.totalorder %s157, 1
        %s161 = scalar_select %p160, %s157, 1
        %s162 = smul.addr %s159, 2
        %s163 = sadd.s32 %s161, %s162
        %s164 = smul.addr %s163, 4
        %s165 = scalar_lea.vmem %s0, %s164
        %s166 = smul.u32 16, %s16
        %s167 = smul.u32 2, %s17
      $region28: #{propagate_pallas.1} parent=23 // pred_fallthru
        _
    $region24: #{propagate_pallas.1} parent=5 // pred_fallthru
      _
    %p168 = scmp.le.s32.totalorder 1, %s9
    %p169 = scmp.lt.s32.totalorder %s9, 3
    %p170 = pnand %p168, %p169
    %p171 = pneg %p170
    // Predicated region
    $region29: #{propagate_pallas.1} parent=5 // pred_check
      _
    $region30: #{propagate_pallas.1} parent=5 // pred_check_branch
      %173 = sbr.rel (%p170) target = $region32
    $region31: #{propagate_pallas.1} parent=5 // pred_region
      %s174 = ssub.s32 %s9, 1
      %s175 = smul.u32 16, %s18
      %s176 = smul.u32 2, %s19
      %p177 = scmp.lt.s32.totalorder %s175, 31
      %s178 = scalar_select %p177, %s175, 31
      %p179 = scmp.lt.s32.totalorder %s176, 1
      %s180 = scalar_select %p179, %s176, 1
      %s181 = smul.addr %s178, 2
      %s182 = sadd.s32 %s180, %s181
      %s183 = smul.addr %s182, 4
      %s184 = scalar_lea.vmem %s0, %s183
      %p185 = pneg %p49
      %p186 = pneg %p46
      %s187 = smul.u32 32, %s19
      %p188 = scmp.lt.s32.totalorder %s187, 31
      %s189 = scalar_select %p188, %s187, 31
      %s190 = smul.addr %s189, 4
      %s191 = scalar_lea.vmem %s1, %s190
      %p192 = pneg %p75
      %p193 = pneg %p72
      %p194 = pneg %p96
      %p195 = pneg %p93
      %p196 = pneg %p122
      %p197 = pneg %p119
      %s198 = smul.u32 16, %s18
      %p199 = scmp.lt.s32.totalorder %s198, 31
      %s200 = scalar_select %p199, %s198, 31
      %s201 = smul.addr %s200, 8
      %s202 = scalar_lea.vmem %s3, %s201
      %s203 = smul.u32 16, %s18
      %s204 = smul.u32 2, %s19
      %p205 = scmp.lt.s32.totalorder %s203, 31
      %s206 = scalar_select %p205, %s203, 31
      %p207 = scmp.lt.s32.totalorder %s204, 1
      %s208 = scalar_select %p207, %s204, 1
      %s209 = smul.addr %s206, 2
      %s210 = sadd.s32 %s208, %s209
      %s211 = smul.addr %s210, 4
      %s212 = scalar_lea.vmem %s0, %s211
      %s213 = smul.u32 16, %s18
      %s214 = smul.u32 2, %s19
      %s215 = smul.u32 32, %s19
      %p216 = scmp.lt.s32.totalorder %s215, 31
      %s217 = scalar_select %p216, %s215, 31
      %s218 = smul.addr %s217, 4
      %s219 = scalar_lea.vmem %s1, %s218
      %s220 = smul.u32 32, %s19
      %s221 = smul.u32 16, %s18
      %p222 = scmp.lt.s32.totalorder %s221, 31
      %s223 = scalar_select %p222, %s221, 31
      %s224 = smul.addr %s223, 8
      %s225 = scalar_lea.vmem %s3, %s224
      %s226 = smul.u32 16, %s18
      %p228 = scmp.eq.s32.totalorder %s19, 0
      // Predicated region
      $region33: #{propagate_pallas.1} parent=31 // pred_check
        %p229 = pneg %p228
      $region34: #{propagate_pallas.1} parent=31 // pred_check_branch
        %231 = sbr.rel (%p229) target = $region36
      $region35: #{propagate_pallas.1} parent=31 // pred_region
        %232 = vst [vmem:[%s225] sm:$0xff] 0.0
        %233 = vst [vmem:[%s225 + $0x8] sm:$0xff] 0.0
        %234 = vst [vmem:[%s225 + $0x10] sm:$0xff] 0.0
        %235 = vst [vmem:[%s225 + $0x18] sm:$0xff] 0.0
        %236 = vst [vmem:[%s225 + $0x20] sm:$0xff] 0.0
        %237 = vst [vmem:[%s225 + $0x28] sm:$0xff] 0.0
        %238 = vst [vmem:[%s225 + $0x30] sm:$0xff] 0.0
        %239 = vst [vmem:[%s225 + $0x38] sm:$0xff] 0.0
        %240 = vst [vmem:[%s225 + $0x40] sm:$0xff] 0.0
        %241 = vst [vmem:[%s225 + $0x48] sm:$0xff] 0.0
        %242 = vst [vmem:[%s225 + $0x50] sm:$0xff] 0.0
        %243 = vst [vmem:[%s225 + $0x58] sm:$0xff] 0.0
        %244 = vst [vmem:[%s225 + $0x60] sm:$0xff] 0.0
        %245 = vst [vmem:[%s225 + $0x68] sm:$0xff] 0.0
        %246 = vst [vmem:[%s225 + $0x70] sm:$0xff] 0.0
        %247 = vst [vmem:[%s225 + $0x78] sm:$0xff] 0.0
      $region36: #{propagate_pallas.1} parent=31 // pred_fallthru
        _
      %v248 = vld [vmem:[%s219] sm:$0xf]
      %v249 = vld [vmem:[%s219 + $0x4] sm:$0xf]
      %v250 = vld [vmem:[%s219 + $0x8] sm:$0xf]
      %v251 = vld [vmem:[%s219 + $0xc] sm:$0xf]
      %v252 = vld [vmem:[%s219 + $0x10] sm:$0xf]
      %v253 = vld [vmem:[%s219 + $0x14] sm:$0xf]
      %v254 = vld [vmem:[%s219 + $0x18] sm:$0xf]
      %v255 = vld [vmem:[%s219 + $0x1c] sm:$0xf]
      %v256 = vld [vmem:[%s219 + $0x20] sm:$0xf]
      %v257 = vld [vmem:[%s219 + $0x24] sm:$0xf]
      %v258 = vld [vmem:[%s219 + $0x28] sm:$0xf]
      %v259 = vld [vmem:[%s219 + $0x2c] sm:$0xf]
      %v260 = vld [vmem:[%s219 + $0x30] sm:$0xf]
      %v261 = vld [vmem:[%s219 + $0x34] sm:$0xf]
      %v262 = vld [vmem:[%s219 + $0x38] sm:$0xf]
      %v263 = vld [vmem:[%s219 + $0x3c] sm:$0xf]
      %v264 = vld [vmem:[%s219 + $0x40] sm:$0xf]
      %v265 = vld [vmem:[%s219 + $0x44] sm:$0xf]
      %v266 = vld [vmem:[%s219 + $0x48] sm:$0xf]
      %v267 = vld [vmem:[%s219 + $0x4c] sm:$0xf]
      %v268 = vld [vmem:[%s219 + $0x50] sm:$0xf]
      %v269 = vld [vmem:[%s219 + $0x54] sm:$0xf]
      %v270 = vld [vmem:[%s219 + $0x58] sm:$0xf]
      %v271 = vld [vmem:[%s219 + $0x5c] sm:$0xf]
      %v272 = vld [vmem:[%s219 + $0x60] sm:$0xf]
      %v273 = vld [vmem:[%s219 + $0x64] sm:$0xf]
      %v274 = vld [vmem:[%s219 + $0x68] sm:$0xf]
      %v275 = vld [vmem:[%s219 + $0x6c] sm:$0xf]
      %v276 = vld [vmem:[%s219 + $0x70] sm:$0xf]
      %v277 = vld [vmem:[%s219 + $0x74] sm:$0xf]
      %v278 = vld [vmem:[%s219 + $0x78] sm:$0xf]
      %v279 = vld [vmem:[%s219 + $0x7c] sm:$0xf]
      %v280 = vld [vmem:[%s2] sm:$0xf]
      %v281 = vld [vmem:[%s2 + $0x4] sm:$0xf]
      %v282 = vld [vmem:[%s2 + $0x8] sm:$0xf]
      %v283 = vld [vmem:[%s2 + $0xc] sm:$0xf]
      %v284 = vld [vmem:[%s2 + $0x10] sm:$0xf]
      %v285 = vld [vmem:[%s2 + $0x14] sm:$0xf]
      %v286 = vld [vmem:[%s2 + $0x18] sm:$0xf]
      %v287 = vld [vmem:[%s2 + $0x1c] sm:$0xf]
      %v288 = vld [vmem:[%s2 + $0x20] sm:$0xf]
      %v289 = vld [vmem:[%s2 + $0x24] sm:$0xf]
      %v290 = vld [vmem:[%s2 + $0x28] sm:$0xf]
      %v291 = vld [vmem:[%s2 + $0x2c] sm:$0xf]
      %v292 = vld [vmem:[%s2 + $0x30] sm:$0xf]
      %v293 = vld [vmem:[%s2 + $0x34] sm:$0xf]
      %v294 = vld [vmem:[%s2 + $0x38] sm:$0xf]
      %v295 = vld [vmem:[%s2 + $0x3c] sm:$0xf]
      %v328 = vunpack.c.l.b16 %v248
      %v329 = vunpack.c.l.b16 %v249
      %v330 = vunpack.c.l.b16 %v250
      %v331 = vunpack.c.l.b16 %v251
      %v332 = vunpack.c.l.b16 %v252
      %v333 = vunpack.c.l.b16 %v253
      %v334 = vunpack.c.l.b16 %v254
      %v335 = vunpack.c.l.b16 %v255
      %v336 = vunpack.c.l.b16 %v256
      %v337 = vunpack.c.l.b16 %v257
      %v338 = vunpack.c.l.b16 %v258
      %v339 = vunpack.c.l.b16 %v259
      %v340 = vunpack.c.l.b16 %v260
      %v341 = vunpack.c.l.b16 %v261
      %v342 = vunpack.c.l.b16 %v262
      %v343 = vunpack.c.l.b16 %v263
      %v344 = vunpack.c.l.b16 %v264
      %v345 = vunpack.c.l.b16 %v265
      %v346 = vunpack.c.l.b16 %v266
      %v347 = vunpack.c.l.b16 %v267
      %v348 = vunpack.c.l.b16 %v268
      %v349 = vunpack.c.l.b16 %v269
      %v350 = vunpack.c.l.b16 %v270
      %v351 = vunpack.c.l.b16 %v271
      %v352 = vunpack.c.l.b16 %v272
      %v353 = vunpack.c.l.b16 %v273
      %v354 = vunpack.c.l.b16 %v274
      %v355 = vunpack.c.l.b16 %v275
      %v356 = vunpack.c.l.b16 %v276
      %v357 = vunpack.c.l.b16 %v277
      %v358 = vunpack.c.l.b16 %v278
      %v359 = vunpack.c.l.b16 %v279
      %v360 = vpack.c.b16 %v329, %v328
      %v361 = vpack.c.b16 %v331, %v330
      %v362 = vpack.c.b16 %v333, %v332
      %v363 = vpack.c.b16 %v335, %v334
      %v364 = vpack.c.b16 %v337, %v336
      %v365 = vpack.c.b16 %v339, %v338
      %v366 = vpack.c.b16 %v341, %v340
      %v367 = vpack.c.b16 %v343, %v342
      %v368 = vpack.c.b16 %v345, %v344
      %v369 = vpack.c.b16 %v347, %v346
      %v370 = vpack.c.b16 %v349, %v348
      %v371 = vpack.c.b16 %v351, %v350
      %v372 = vpack.c.b16 %v353, %v352
      %v373 = vpack.c.b16 %v355, %v354
      %v374 = vpack.c.b16 %v357, %v356
      %v375 = vpack.c.b16 %v359, %v358
      %v408 = vunpack.c.l.b16 %v280
      %v409 = vunpack.c.l.b16 %v281
      %v410 = vunpack.c.l.b16 %v282
      %v411 = vunpack.c.l.b16 %v283
      %v412 = vunpack.c.l.b16 %v284
      %v413 = vunpack.c.l.b16 %v285
      %v414 = vunpack.c.l.b16 %v286
      %v415 = vunpack.c.l.b16 %v287
      %v416 = vunpack.c.l.b16 %v288
      %v417 = vunpack.c.l.b16 %v289
      %v418 = vunpack.c.l.b16 %v290
      %v419 = vunpack.c.l.b16 %v291
      %v420 = vunpack.c.l.b16 %v292
      %v421 = vunpack.c.l.b16 %v293
      %v422 = vunpack.c.l.b16 %v294
      %v423 = vunpack.c.l.b16 %v295
      %v424 = vpack.c.b16 %v409, %v408
      %v425 = vpack.c.b16 %v411, %v410
      %v426 = vpack.c.b16 %v413, %v412
      %v427 = vpack.c.b16 %v415, %v414
      %v428 = vpack.c.b16 %v417, %v416
      %v429 = vpack.c.b16 %v419, %v418
      %v430 = vpack.c.b16 %v421, %v420
      %v431 = vpack.c.b16 %v423, %v422
      %440 = vmatprep.subr.bf16.mxu0 0
      %441 = vmatpush1.bf16.msra.mxu0 %v431
      %442 = vmatprep.subr.bf16.mxu0 0
      %443 = vmatpush1.bf16.msra.mxu0 %v430
      %444 = vmatprep.subr.bf16.mxu0 0
      %445 = vmatpush1.bf16.msra.mxu0 %v429
      %446 = vmatprep.subr.bf16.mxu0 0
      %447 = vmatpush1.bf16.msra.mxu0 %v428
      %448 = vmatprep.subr.bf16.mxu0 0
      %449 = vmatpush1.bf16.msra.mxu0 %v427
      %450 = vmatprep.subr.bf16.mxu0 0
      %451 = vmatpush1.bf16.msra.mxu0 %v426
      %452 = vmatprep.subr.bf16.mxu0 0
      %453 = vmatpush1.bf16.msra.mxu0 %v425
      %454 = vmatprep.subr.bf16.mxu0 0
      %455 = vmatpush1.bf16.msra.mxu0 %v424
      %456 = vmatprep.subr.bf16.mxu0 0
      %457 = vmatpush2.bf16.msra.mxu0 0
      %458 = vmatprep.subr.bf16.mxu0 0
      %459 = vmatpush2.bf16.msra.mxu0 0
      %460 = vmatprep.subr.bf16.mxu0 0
      %461 = vmatpush2.bf16.msra.mxu0 0
      %462 = vmatprep.subr.bf16.mxu0 0
      %463 = vmatpush2.bf16.msra.mxu0 0
      %464 = vmatprep.subr.bf16.mxu0 0
      %465 = vmatpush2.bf16.msra.mxu0 0
      %466 = vmatprep.subr.bf16.mxu0 0
      %467 = vmatpush2.bf16.msra.mxu0 0
      %468 = vmatprep.subr.bf16.mxu0 0
      %469 = vmatpush2.bf16.msra.mxu0 0
      %470 = vmatprep.subr.bf16.mxu0 0
      %471 = vmatpush2.bf16.msra.mxu0 0
      %472 = vmatprep.mubr.bf16.mxu0 0
      %473 = vmatmul.mubr.bf16.gmra.mxu0 %v360
      %v474 = vpop.f32.mrf.mxu0
      %v475 = vadd.f32 0.0, %v474
      %v476 = vpop.f32.mrf.mxu0
      %v477 = vpop.f32.mrf.mxu0
      %v478 = vadd.f32 0.0, %v477
      %v479 = vpop.f32.mrf.mxu0
      %480 = vmatprep.mubr.bf16.mxu0 0
      %481 = vmatmul.mubr.bf16.gmra.mxu0 %v361
      %v482 = vpop.f32.mrf.mxu0
      %v483 = vadd.f32 0.0, %v482
      %v484 = vpop.f32.mrf.mxu0
      %v485 = vpop.f32.mrf.mxu0
      %v486 = vadd.f32 0.0, %v485
      %v487 = vpop.f32.mrf.mxu0
      %488 = vmatprep.mubr.bf16.mxu0 0
      %489 = vmatmul.mubr.bf16.gmra.mxu0 %v362
      %v490 = vpop.f32.mrf.mxu0
      %v491 = vadd.f32 0.0, %v490
      %v492 = vpop.f32.mrf.mxu0
      %v493 = vpop.f32.mrf.mxu0
      %v494 = vadd.f32 0.0, %v493
      %v495 = vpop.f32.mrf.mxu0
      %496 = vmatprep.mubr.bf16.mxu0 0
      %497 = vmatmul.mubr.bf16.gmra.mxu0 %v363
      %v498 = vpop.f32.mrf.mxu0
      %v499 = vadd.f32 0.0, %v498
      %v500 = vpop.f32.mrf.mxu0
      %v501 = vpop.f32.mrf.mxu0
      %v502 = vadd.f32 0.0, %v501
      %v503 = vpop.f32.mrf.mxu0
      %504 = vmatprep.mubr.bf16.mxu0 0
      %505 = vmatmul.mubr.bf16.gmra.mxu0 %v364
      %v506 = vpop.f32.mrf.mxu0
      %v507 = vadd.f32 0.0, %v506
      %v508 = vpop.f32.mrf.mxu0
      %v509 = vpop.f32.mrf.mxu0
      %v510 = vadd.f32 0.0, %v509
      %v511 = vpop.f32.mrf.mxu0
      %512 = vmatprep.mubr.bf16.mxu0 0
      %513 = vmatmul.mubr.bf16.gmra.mxu0 %v365
      %v514 = vpop.f32.mrf.mxu0
      %v515 = vadd.f32 0.0, %v514
      %v516 = vpop.f32.mrf.mxu0
      %v517 = vpop.f32.mrf.mxu0
      %v518 = vadd.f32 0.0, %v517
      %v519 = vpop.f32.mrf.mxu0
      %520 = vmatprep.mubr.bf16.mxu0 0
      %521 = vmatmul.mubr.bf16.gmra.mxu0 %v366
      %v522 = vpop.f32.mrf.mxu0
      %v523 = vadd.f32 0.0, %v522
      %v524 = vpop.f32.mrf.mxu0
      %v525 = vpop.f32.mrf.mxu0
      %v526 = vadd.f32 0.0, %v525
      %v527 = vpop.f32.mrf.mxu0
      %528 = vmatprep.mubr.bf16.mxu0 0
      %529 = vmatmul.mubr.bf16.gmra.mxu0 %v367
      %v530 = vpop.f32.mrf.mxu0
      %v531 = vadd.f32 0.0, %v530
      %v532 = vpop.f32.mrf.mxu0
      %v533 = vpop.f32.mrf.mxu0
      %v534 = vadd.f32 0.0, %v533
      %v535 = vpop.f32.mrf.mxu0
      %536 = vmatprep.mubr.bf16.mxu0 0
      %537 = vmatmul.mubr.bf16.gmra.mxu0 %v368
      %v538 = vpop.f32.mrf.mxu0
      %v539 = vadd.f32 0.0, %v538
      %v540 = vpop.f32.mrf.mxu0
      %v541 = vpop.f32.mrf.mxu0
      %v542 = vadd.f32 0.0, %v541
      %v543 = vpop.f32.mrf.mxu0
      %544 = vmatprep.mubr.bf16.mxu0 0
      %545 = vmatmul.mubr.bf16.gmra.mxu0 %v369
      %v546 = vpop.f32.mrf.mxu0
      %v547 = vadd.f32 0.0, %v546
      %v548 = vpop.f32.mrf.mxu0
      %v549 = vpop.f32.mrf.mxu0
      %v550 = vadd.f32 0.0, %v549
      %v551 = vpop.f32.mrf.mxu0
      %552 = vmatprep.mubr.bf16.mxu0 0
      %553 = vmatmul.mubr.bf16.gmra.mxu0 %v370
      %v554 = vpop.f32.mrf.mxu0
      %v555 = vadd.f32 0.0, %v554
      %v556 = vpop.f32.mrf.mxu0
      %v557 = vpop.f32.mrf.mxu0
      %v558 = vadd.f32 0.0, %v557
      %v559 = vpop.f32.mrf.mxu0
      %560 = vmatprep.mubr.bf16.mxu0 0
      %561 = vmatmul.mubr.bf16.gmra.mxu0 %v371
      %v562 = vpop.f32.mrf.mxu0
      %v563 = vadd.f32 0.0, %v562
      %v564 = vpop.f32.mrf.mxu0
      %v565 = vpop.f32.mrf.mxu0
      %v566 = vadd.f32 0.0, %v565
      %v567 = vpop.f32.mrf.mxu0
      %568 = vmatprep.mubr.bf16.mxu0 0
      %569 = vmatmul.mubr.bf16.gmra.mxu0 %v372
      %v570 = vpop.f32.mrf.mxu0
      %v571 = vadd.f32 0.0, %v570
      %v572 = vpop.f32.mrf.mxu0
      %v573 = vpop.f32.mrf.mxu0
      %v574 = vadd.f32 0.0, %v573
      %v575 = vpop.f32.mrf.mxu0
      %576 = vmatprep.mubr.bf16.mxu0 0
      %577 = vmatmul.mubr.bf16.gmra.mxu0 %v373
      %v578 = vpop.f32.mrf.mxu0
      %v579 = vadd.f32 0.0, %v578
      %v580 = vpop.f32.mrf.mxu0
      %v581 = vpop.f32.mrf.mxu0
      %v582 = vadd.f32 0.0, %v581
      %v583 = vpop.f32.mrf.mxu0
      %584 = vmatprep.mubr.bf16.mxu0 0
      %585 = vmatmul.mubr.bf16.gmra.mxu0 %v374
      %v586 = vpop.f32.mrf.mxu0
      %v587 = vadd.f32 0.0, %v586
      %v588 = vpop.f32.mrf.mxu0
      %v589 = vpop.f32.mrf.mxu0
      %v590 = vadd.f32 0.0, %v589
      %v591 = vpop.f32.mrf.mxu0
      %592 = vmatprep.mubr.bf16.mxu0 0
      %593 = vmatmul.mubr.bf16.gmra.mxu0 %v375
      %v594 = vpop.f32.mrf.mxu0
      %v595 = vadd.f32 0.0, %v594
      %v596 = vpop.f32.mrf.mxu0
      %v597 = vpop.f32.mrf.mxu0
      %v598 = vadd.f32 0.0, %v597
      %v599 = vpop.f32.mrf.mxu0
      %600 = vdwg.mxu0
      %v601 = vld [vmem:[%s225] sm:$0xff]
      %v602 = vld [vmem:[%s225 + $0x8] sm:$0xff]
      %v603 = vld [vmem:[%s225 + $0x10] sm:$0xff]
      %v604 = vld [vmem:[%s225 + $0x18] sm:$0xff]
      %v605 = vld [vmem:[%s225 + $0x20] sm:$0xff]
      %v606 = vld [vmem:[%s225 + $0x28] sm:$0xff]
      %v607 = vld [vmem:[%s225 + $0x30] sm:$0xff]
      %v608 = vld [vmem:[%s225 + $0x38] sm:$0xff]
      %v609 = vld [vmem:[%s225 + $0x40] sm:$0xff]
      %v610 = vld [vmem:[%s225 + $0x48] sm:$0xff]
      %v611 = vld [vmem:[%s225 + $0x50] sm:$0xff]
      %v612 = vld [vmem:[%s225 + $0x58] sm:$0xff]
      %v613 = vld [vmem:[%s225 + $0x60] sm:$0xff]
      %v614 = vld [vmem:[%s225 + $0x68] sm:$0xff]
      %v615 = vld [vmem:[%s225 + $0x70] sm:$0xff]
      %v616 = vld [vmem:[%s225 + $0x78] sm:$0xff]
      %v617 = vld [vmem:[%s212] sm:$0xff]
      %v618 = vld [vmem:[%s212 + $0x8] sm:$0xff]
      %v619 = vld [vmem:[%s212 + $0x10] sm:$0xff]
      %v620 = vld [vmem:[%s212 + $0x18] sm:$0xff]
      %v621 = vld [vmem:[%s212 + $0x20] sm:$0xff]
      %v622 = vld [vmem:[%s212 + $0x28] sm:$0xff]
      %v623 = vld [vmem:[%s212 + $0x30] sm:$0xff]
      %v624 = vld [vmem:[%s212 + $0x38] sm:$0xff]
      %v625 = vld [vmem:[%s212 + $0x40] sm:$0xff]
      %v626 = vld [vmem:[%s212 + $0x48] sm:$0xff]
      %v627 = vld [vmem:[%s212 + $0x50] sm:$0xff]
      %v628 = vld [vmem:[%s212 + $0x58] sm:$0xff]
      %v629 = vld [vmem:[%s212 + $0x60] sm:$0xff]
      %v630 = vld [vmem:[%s212 + $0x68] sm:$0xff]
      %v631 = vld [vmem:[%s212 + $0x70] sm:$0xff]
      %v632 = vld [vmem:[%s212 + $0x78] sm:$0xff]
      %v633 = vpack.c.bf16 %v478, %v475
      %v634 = vpack.c.bf16 %v486, %v483
      %v635 = vpack.c.bf16 %v494, %v491
      %v636 = vpack.c.bf16 %v502, %v499
      %v637 = vpack.c.bf16 %v510, %v507
      %v638 = vpack.c.bf16 %v518, %v515
      %v639 = vpack.c.bf16 %v526, %v523
      %v640 = vpack.c.bf16 %v534, %v531
      %v641 = vpack.c.bf16 %v542, %v539
      %v642 = vpack.c.bf16 %v550, %v547
      %v643 = vpack.c.bf16 %v558, %v555
      %v644 = vpack.c.bf16 %v566, %v563
      %v645 = vpack.c.bf16 %v574, %v571
      %v646 = vpack.c.bf16 %v582, %v579
      %v647 = vpack.c.bf16 %v590, %v587
      %v648 = vpack.c.bf16 %v598, %v595
      %v665 = vunpack.c.l.b16 %v617
      %v666 = vunpack.c.h.b16 %v617
      %v667 = vunpack.c.l.b16 %v618
      %v668 = vunpack.c.h.b16 %v618
      %v669 = vunpack.c.l.b16 %v619
      %v670 = vunpack.c.h.b16 %v619
      %v671 = vunpack.c.l.b16 %v620
      %v672 = vunpack.c.h.b16 %v620
      %v673 = vunpack.c.l.b16 %v621
      %v674 = vunpack.c.h.b16 %v621
      %v675 = vunpack.c.l.b16 %v622
      %v676 = vunpack.c.h.b16 %v622
      %v677 = vunpack.c.l.b16 %v623
      %v678 = vunpack.c.h.b16 %v623
      %v679 = vunpack.c.l.b16 %v624
      %v680 = vunpack.c.h.b16 %v624
      %v681 = vunpack.c.l.b16 %v625
      %v682 = vunpack.c.h.b16 %v625
      %v683 = vunpack.c.l.b16 %v626
      %v684 = vunpack.c.h.b16 %v626
      %v685 = vunpack.c.l.b16 %v627
      %v686 = vunpack.c.h.b16 %v627
      %v687 = vunpack.c.l.b16 %v628
      %v688 = vunpack.c.h.b16 %v628
      %v689 = vunpack.c.l.b16 %v629
      %v690 = vunpack.c.h.b16 %v629
      %v691 = vunpack.c.l.b16 %v630
      %v692 = vunpack.c.h.b16 %v630
      %v693 = vunpack.c.l.b16 %v631
      %v694 = vunpack.c.h.b16 %v631
      %v695 = vunpack.c.l.b16 %v632
      %v696 = vunpack.c.h.b16 %v632
      %v697 = vpack.c.b16 %v667, %v665
      %v698 = vpack.c.b16 %v668, %v666
      %v699 = vpack.c.b16 %v671, %v669
      %v700 = vpack.c.b16 %v672, %v670
      %v701 = vpack.c.b16 %v675, %v673
      %v702 = vpack.c.b16 %v676, %v674
      %v703 = vpack.c.b16 %v679, %v677
      %v704 = vpack.c.b16 %v680, %v678
      %v705 = vpack.c.b16 %v683, %v681
      %v706 = vpack.c.b16 %v684, %v682
      %v707 = vpack.c.b16 %v687, %v685
      %v708 = vpack.c.b16 %v688, %v686
      %v709 = vpack.c.b16 %v691, %v689
      %v710 = vpack.c.b16 %v692, %v690
      %v711 = vpack.c.b16 %v695, %v693
      %v712 = vpack.c.b16 %v696, %v694
      %729 = vmatprep.subr.bf16.mxu0 0
      %730 = vmatpush1.bf16.msra.mxu0 %v640
      %731 = vmatprep.subr.bf16.mxu0 0
      %732 = vmatpush1.bf16.msra.mxu0 %v639
      %733 = vmatprep.subr.bf16.mxu0 0
      %734 = vmatpush1.bf16.msra.mxu0 %v638
      %735 = vmatprep.subr.bf16.mxu0 0
      %736 = vmatpush1.bf16.msra.mxu0 %v637
      %737 = vmatprep.subr.bf16.mxu0 0
      %738 = vmatpush1.bf16.msra.mxu0 %v636
      %739 = vmatprep.subr.bf16.mxu0 0
      %740 = vmatpush1.bf16.msra.mxu0 %v635
      %741 = vmatprep.subr.bf16.mxu0 0
      %742 = vmatpush1.bf16.msra.mxu0 %v634
      %743 = vmatprep.subr.bf16.mxu0 0
      %744 = vmatpush1.bf16.msra.mxu0 %v633
      %745 = vmatprep.subr.bf16.mxu0 0
      %746 = vmatpush2.bf16.msra.mxu0 %v648
      %747 = vmatprep.subr.bf16.mxu0 0
      %748 = vmatpush2.bf16.msra.mxu0 %v647
      %749 = vmatprep.subr.bf16.mxu0 0
      %750 = vmatpush2.bf16.msra.mxu0 %v646
      %751 = vmatprep.subr.bf16.mxu0 0
      %752 = vmatpush2.bf16.msra.mxu0 %v645
      %753 = vmatprep.subr.bf16.mxu0 0
      %754 = vmatpush2.bf16.msra.mxu0 %v644
      %755 = vmatprep.subr.bf16.mxu0 0
      %756 = vmatpush2.bf16.msra.mxu0 %v643
      %757 = vmatprep.subr.bf16.mxu0 0
      %758 = vmatpush2.bf16.msra.mxu0 %v642
      %759 = vmatprep.subr.bf16.mxu0 0
      %760 = vmatpush2.bf16.msra.mxu0 %v641
      %761 = vmatprep.mubr.bf16.mxu0 %v698
      %762 = vmatmul.mubr.bf16.gmra.mxu0 %v697
      %v763 = vpop.f32.mrf.mxu0
      %v764 = vadd.f32 0.0, %v763
      %v765 = vpop.f32.mrf.mxu0
      %v766 = vpop.f32.mrf.mxu0
      %v767 = vadd.f32 0.0, %v766
      %v768 = vpop.f32.mrf.mxu0
      %769 = vmatprep.mubr.bf16.mxu0 %v700
      %770 = vmatmul.mubr.bf16.gmra.mxu0 %v699
      %v771 = vpop.f32.mrf.mxu0
      %v772 = vadd.f32 0.0, %v771
      %v773 = vpop.f32.mrf.mxu0
      %v774 = vpop.f32.mrf.mxu0
      %v775 = vadd.f32 0.0, %v774
      %v776 = vpop.f32.mrf.mxu0
      %777 = vmatprep.mubr.bf16.mxu0 %v702
      %778 = vmatmul.mubr.bf16.gmra.mxu0 %v701
      %v779 = vpop.f32.mrf.mxu0
      %v780 = vadd.f32 0.0, %v779
      %v781 = vpop.f32.mrf.mxu0
      %v782 = vpop.f32.mrf.mxu0
      %v783 = vadd.f32 0.0, %v782
      %v784 = vpop.f32.mrf.mxu0
      %785 = vmatprep.mubr.bf16.mxu0 %v704
      %786 = vmatmul.mubr.bf16.gmra.mxu0 %v703
      %v787 = vpop.f32.mrf.mxu0
      %v788 = vadd.f32 0.0, %v787
      %v789 = vpop.f32.mrf.mxu0
      %v790 = vpop.f32.mrf.mxu0
      %v791 = vadd.f32 0.0, %v790
      %v792 = vpop.f32.mrf.mxu0
      %793 = vmatprep.mubr.bf16.mxu0 %v706
      %794 = vmatmul.mubr.bf16.gmra.mxu0 %v705
      %v795 = vpop.f32.mrf.mxu0
      %v796 = vadd.f32 0.0, %v795
      %v797 = vpop.f32.mrf.mxu0
      %v798 = vpop.f32.mrf.mxu0
      %v799 = vadd.f32 0.0, %v798
      %v800 = vpop.f32.mrf.mxu0
      %801 = vmatprep.mubr.bf16.mxu0 %v708
      %802 = vmatmul.mubr.bf16.gmra.mxu0 %v707
      %v803 = vpop.f32.mrf.mxu0
      %v804 = vadd.f32 0.0, %v803
      %v805 = vpop.f32.mrf.mxu0
      %v806 = vpop.f32.mrf.mxu0
      %v807 = vadd.f32 0.0, %v806
      %v808 = vpop.f32.mrf.mxu0
      %809 = vmatprep.mubr.bf16.mxu0 %v710
      %810 = vmatmul.mubr.bf16.gmra.mxu0 %v709
      %v811 = vpop.f32.mrf.mxu0
      %v812 = vadd.f32 0.0, %v811
      %v813 = vpop.f32.mrf.mxu0
      %v814 = vpop.f32.mrf.mxu0
      %v815 = vadd.f32 0.0, %v814
      %v816 = vpop.f32.mrf.mxu0
      %817 = vmatprep.mubr.bf16.mxu0 %v712
      %818 = vmatmul.mubr.bf16.gmra.mxu0 %v711
      %v819 = vpop.f32.mrf.mxu0
      %v820 = vadd.f32 0.0, %v819
      %v821 = vpop.f32.mrf.mxu0
      %v822 = vpop.f32.mrf.mxu0
      %v823 = vadd.f32 0.0, %v822
      %v824 = vpop.f32.mrf.mxu0
      %825 = vdwg.mxu0
      %v826 = vadd.f32 %v601, %v764
      %v827 = vadd.f32 %v602, %v767
      %v828 = vadd.f32 %v603, %v772
      %v829 = vadd.f32 %v604, %v775
      %v830 = vadd.f32 %v605, %v780
      %v831 = vadd.f32 %v606, %v783
      %v832 = vadd.f32 %v607, %v788
      %v833 = vadd.f32 %v608, %v791
      %v834 = vadd.f32 %v609, %v796
      %v835 = vadd.f32 %v610, %v799
      %v836 = vadd.f32 %v611, %v804
      %v837 = vadd.f32 %v612, %v807
      %v838 = vadd.f32 %v613, %v812
      %v839 = vadd.f32 %v614, %v815
      %v840 = vadd.f32 %v615, %v820
      %v841 = vadd.f32 %v616, %v823
      %842 = vst [vmem:[%s225] sm:$0xff] %v826
      %843 = vst [vmem:[%s225 + $0x8] sm:$0xff] %v827
      %844 = vst [vmem:[%s225 + $0x10] sm:$0xff] %v828
      %845 = vst [vmem:[%s225 + $0x18] sm:$0xff] %v829
      %846 = vst [vmem:[%s225 + $0x20] sm:$0xff] %v830
      %847 = vst [vmem:[%s225 + $0x28] sm:$0xff] %v831
      %848 = vst [vmem:[%s225 + $0x30] sm:$0xff] %v832
      %849 = vst [vmem:[%s225 + $0x38] sm:$0xff] %v833
      %850 = vst [vmem:[%s225 + $0x40] sm:$0xff] %v834
      %851 = vst [vmem:[%s225 + $0x48] sm:$0xff] %v835
      %852 = vst [vmem:[%s225 + $0x50] sm:$0xff] %v836
      %853 = vst [vmem:[%s225 + $0x58] sm:$0xff] %v837
      %854 = vst [vmem:[%s225 + $0x60] sm:$0xff] %v838
      %855 = vst [vmem:[%s225 + $0x68] sm:$0xff] %v839
      %856 = vst [vmem:[%s225 + $0x70] sm:$0xff] %v840
      %857 = vst [vmem:[%s225 + $0x78] sm:$0xff] %v841
      %s858 = smul.u32 16, %s18
      %p859 = scmp.lt.s32.totalorder %s858, 31
      %s860 = scalar_select %p859, %s858, 31
      %s861 = smul.addr %s860, 8
      %s862 = scalar_lea.vmem %s3, %s861
      // Predicated region
      $region37: #{propagate_pallas.1} parent=31 // pred_check
        %p863 = pneg %p119
      $region38: #{propagate_pallas.1} parent=31 // pred_check_branch
        %865 = sbr.rel (%p863) target = $region40
      $region39: #{propagate_pallas.1} parent=31 // pred_region
        %s866 = smul.u32 16, %s18
      $region40: #{propagate_pallas.1} parent=31 // pred_fallthru
        _
    $region32: #{propagate_pallas.1} parent=5 // pred_fallthru
      _
    %p867 = scmp.le.s32.totalorder 2, %s9
    // Predicated region
    $region41: #{propagate_pallas.1} parent=5 // pred_check
      %p868 = pneg %p867
    $region42: #{propagate_pallas.1} parent=5 // pred_check_branch
      %870 = sbr.rel (%p868) target = $region44
    $region43: #{propagate_pallas.1} parent=5 // pred_region
      %s871 = ssub.s32 %s9, 2
      // Predicated region
      $region45: #{propagate_pallas.1} parent=43 // pred_check
        %p872 = pneg %p125
      $region46: #{propagate_pallas.1} parent=43 // pred_check_branch
        %874 = sbr.rel (%p872) target = $region48
      $region47: #{propagate_pallas.1} parent=43 // pred_region
        %s875 = smul.u32 16, %s20
        %p876 = scmp.lt.s32.totalorder %s875, 31
        %s877 = scalar_select %p876, %s875, 31
        %s878 = smul.addr %s877, 8
        %s879 = scalar_lea.vmem %s3, %s878
      $region48: #{propagate_pallas.1} parent=43 // pred_fallthru
        _
    $region44: #{propagate_pallas.1} parent=5 // pred_fallthru
      _
  $region6: #{propagate_pallas.1} parent=0 // loop_footer
    %s13 = sadd.s32 1, %s9
  $region7: #{propagate_pallas.1} parent=0 // loop_footer_branch
    %8 = sbr.rel target = $region3
  $region8: #{propagate_pallas.1} parent=0 // loop_exit
    _

</llo_original>
